<compile_context>
chip_gen: v7x
topology: tpu7x:2x2x1
jax: 0.10.0
libtpu: 0.0.40
codegen_flags: <defaults>
</compile_context>

<pallas_src>
import jax
import jax.numpy as jnp
from jax.experimental import pallas as pl
from jax.experimental.pallas import tpu as pltpu

LANE = 128


def net_kernel(x_ref, wp_ref, bp_ref, wft_ref, bf_ref, o_ref):
    # x_ref: [C, S, 128] — one batch element, spatial extent split as S x 128.
    x = x_ref[...]                                           # already f32
    inv_hw = 1.0 / float(x.shape[1] * x.shape[2])

    # Global average pool, two-stage: sublane partial sums, then one lane reduce.
    partial = jnp.sum(x, axis=1)                             # [C, 128]
    gap = jnp.sum(partial, axis=-1, keepdims=True) * inv_hw  # [C, 1]

    # Stand-in backbone projection (C -> 1000, padded to 1024):
    # a (M=1, K=3) matmul is degenerate for the MXU, so do C broadcast-FMAs
    # on [1, F0p] vregs instead (VPU), with the bias fused into the same chain.
    feats = bp_ref[...]                                      # [1, F0p]
    for c in range(x.shape[0]):
        feats = feats + gap[c:c + 1, :] * wp_ref[c:c + 1, :]
    feats = jnp.maximum(feats, 0.0)                          # relu0

    # fc head (1000 -> 2): N=2 is degenerate for the MXU, so do K=2
    # elementwise multiplies + cross-lane reduces. Padded lanes are zero in
    # both feats and wft, so they contribute nothing.
    cols = [jnp.sum(feats * wft_ref[k:k + 1, :], axis=-1, keepdims=True)
            for k in range(o_ref.shape[-1])]                 # K x [1, 1]
    out = jnp.concatenate(cols, axis=-1) + bf_ref[...]       # [1, K]
    o_ref[...] = out.astype(o_ref.dtype)


def net_forward(x, wp, bp, wf_t, bf):
    """x: [B, C, H, W] f32. wp: [C,1000], bp: [1000], wf_t: [2,1000] (PyTorch
    nn.Linear layout), bf: [2]. Returns [B, 2] f32 logits."""
    B, C, H, W = x.shape
    HW = H * W
    assert HW % LANE == 0, "spatial extent must be a multiple of 128"
    S = HW // LANE
    F0 = wp.shape[1]
    K = wf_t.shape[0]
    F0p = ((F0 + LANE - 1) // LANE) * LANE   # 1000 -> 1024

    # Zero-pad the feature dim so all VPU ops on `feats` use full, unmasked
    # vregs. Weights AND bias are padded with zeros, so padded features are
    # exactly zero through the relu and contribute nothing to the logits.
    wp_p = jnp.zeros((C, F0p), wp.dtype).at[:, :F0].set(wp)
    bp_p = jnp.zeros((1, F0p), bp.dtype).at[0, :F0].set(bp)
    wf_p = jnp.zeros((K, F0p), wf_t.dtype).at[:, :F0].set(wf_t)
    bf2 = bf.reshape(1, K)

    # Spatial extent laid out as (sublane-groups, 128 lanes) for the staged GAP.
    x4 = x.reshape(B, C, S, LANE)

    out = pl.pallas_call(
        net_kernel,
        out_shape=jax.ShapeDtypeStruct((B, 1, K), jnp.float32),
        grid=(B,),
        in_specs=[
            pl.BlockSpec((None, C, S, LANE), lambda b: (b, 0, 0, 0)),  # x (per batch)
            pl.BlockSpec((C, F0p), lambda b: (0, 0)),                  # stand-in proj W
            pl.BlockSpec((1, F0p), lambda b: (0, 0)),                  # stand-in proj b
            pl.BlockSpec((K, F0p), lambda b: (0, 0)),                  # fc weight [2,1024]
            pl.BlockSpec((1, K), lambda b: (0, 0)),                    # fc bias
        ],
        out_specs=pl.BlockSpec((None, 1, K), lambda b: (b, 0, 0)),
        compiler_params=pltpu.CompilerParams(
            dimension_semantics=("parallel",)),   # batch axis -> v7x megacore
    )(x4, wp_p, bp_p, wf_p, bf2)
    return out.reshape(B, K)


if __name__ == "__main__":
    # Small, deterministic shapes consistent with the module's image input.
    B, C, H, W = 2, 3, 32, 32
    F0, K = 1000, 2

    key = jax.random.PRNGKey(0)
    kx, kwp, kbp, kwf, kbf = jax.random.split(key, 5)

    x = jax.random.normal(kx, (B, C, H, W), dtype=jnp.float32)

    # Deterministic stand-in backbone params (GAP -> 1000 features).
    wp = jax.random.normal(kwp, (C, F0), dtype=jnp.float32) * (1.0 / jnp.sqrt(C))
    bp = jax.random.normal(kbp, (F0,), dtype=jnp.float32) * 0.01

    # fc = nn.Linear(1000, 2): PyTorch layout [out, in], default init
    # U(-1/sqrt(fan_in), 1/sqrt(fan_in)).
    bound = 1.0 / jnp.sqrt(jnp.float32(F0))
    wf_t = jax.random.uniform(kwf, (K, F0), dtype=jnp.float32,
                              minval=-bound, maxval=bound)
    bf = jax.random.uniform(kbf, (K,), dtype=jnp.float32,
                            minval=-bound, maxval=bound)

    out = jax.block_until_ready(net_forward(x, wp, bp, wf_t, bf))

    # Pure-JAX reference of the same computation (sanity check).
    gap = jnp.mean(x.reshape(B, C, H * W), axis=-1)
    ref = jnp.maximum(gap @ wp + bp, 0.0) @ wf_t.T + bf
    assert out.shape == (B, K)
    assert jnp.allclose(out, ref, atol=1e-4, rtol=1e-4)

    print("KERNEL_OK")
</pallas_src>

<mosaic_0001>
module attributes {stable_mosaic.version = 11 : i64} {
  func.func @net_kernel(%arg0: i32, %arg1: memref<1x3x8x128xf32, #tpu.memory_space<vmem>>, %arg2: memref<3x1024xf32, #tpu.memory_space<vmem>>, %arg3: memref<1x1024xf32, #tpu.memory_space<vmem>>, %arg4: memref<2x1024xf32, #tpu.memory_space<vmem>>, %arg5: memref<1x2xf32, #tpu.memory_space<vmem>>, %arg6: memref<1x1x2xf32, #tpu.memory_space<vmem>>) attributes {dimension_semantics = [#tpu.dimension_semantics<parallel>], iteration_bounds = array<i64: 2>, scalar_prefetch = 0 : i64, scratch_operands = 0 : i64, tpu.core_type = #tpu.core_type<tc>, window_params = [{transform_indices = @transform_0, window_bounds = array<i64: 1, 3, 8, 128>}, {pipeline_mode = #tpu.pipeline_mode<synchronous>, transform_indices = @transform_1, window_bounds = array<i64: 3, 1024>}, {pipeline_mode = #tpu.pipeline_mode<synchronous>, transform_indices = @transform_2, window_bounds = array<i64: 1, 1024>}, {pipeline_mode = #tpu.pipeline_mode<synchronous>, transform_indices = @transform_3, window_bounds = array<i64: 2, 1024>}, {pipeline_mode = #tpu.pipeline_mode<synchronous>, transform_indices = @transform_4, window_bounds = array<i64: 1, 2>}, {transform_indices = @transform_5, window_bounds = array<i64: 1, 1, 2>}]} {
    %c0 = arith.constant 0 : index
    %c0_0 = arith.constant 0 : index
    %c0_1 = arith.constant 0 : index
    %c0_2 = arith.constant 0 : index
    %0 = vector.load %arg1[%c0, %c0_0, %c0_1, %c0_2] : memref<1x3x8x128xf32, #tpu.memory_space<vmem>>, vector<1x3x8x128xf32>
    %1 = vector.shape_cast %0 : vector<1x3x8x128xf32> to vector<3x8x128xf32>
    %cst = arith.constant dense<0.000000e+00> : vector<3x128xf32>
    %2 = vector.multi_reduction <add>, %1, %cst [1] : vector<3x8x128xf32> to vector<3x128xf32>
    %cst_3 = arith.constant dense<0.000000e+00> : vector<3xf32>
    %3 = vector.multi_reduction <add>, %2, %cst_3 [1] : vector<3x128xf32> to vector<3xf32>
    %4 = vector.shape_cast %3 : vector<3xf32> to vector<3x1xf32>
    %cst_4 = arith.constant 9.765625E-4 : f32
    %5 = vector.broadcast %cst_4 : f32 to vector<3x1xf32>
    %6 = arith.mulf %4, %5 : vector<3x1xf32>
    %c0_5 = arith.constant 0 : index
    %c0_6 = arith.constant 0 : index
    %7 = vector.load %arg3[%c0_5, %c0_6] : memref<1x1024xf32, #tpu.memory_space<vmem>>, vector<1x1024xf32>
    %8 = vector.extract_strided_slice %6 {offsets = [0, 0], sizes = [1, 1], strides = [1, 1]} : vector<3x1xf32> to vector<1x1xf32>
    %c0_7 = arith.constant 0 : index
    %c0_8 = arith.constant 0 : index
    %9 = vector.load %arg2[%c0_7, %c0_8] : memref<3x1024xf32, #tpu.memory_space<vmem>>, vector<1x1024xf32>
    %10 = vector.broadcast %8 : vector<1x1xf32> to vector<1x1024xf32>
    %11 = arith.mulf %10, %9 : vector<1x1024xf32>
    %12 = arith.addf %7, %11 : vector<1x1024xf32>
    %13 = vector.extract_strided_slice %6 {offsets = [1, 0], sizes = [1, 1], strides = [1, 1]} : vector<3x1xf32> to vector<1x1xf32>
    %c1 = arith.constant 1 : index
    %c0_9 = arith.constant 0 : index
    %14 = vector.load %arg2[%c1, %c0_9] : memref<3x1024xf32, #tpu.memory_space<vmem>>, vector<1x1024xf32>
    %15 = vector.broadcast %13 : vector<1x1xf32> to vector<1x1024xf32>
    %16 = arith.mulf %15, %14 : vector<1x1024xf32>
    %17 = arith.addf %12, %16 : vector<1x1024xf32>
    %18 = vector.extract_strided_slice %6 {offsets = [2, 0], sizes = [1, 1], strides = [1, 1]} : vector<3x1xf32> to vector<1x1xf32>
    %c2 = arith.constant 2 : index
    %c0_10 = arith.constant 0 : index
    %19 = vector.load %arg2[%c2, %c0_10] : memref<3x1024xf32, #tpu.memory_space<vmem>>, vector<1x1024xf32>
    %20 = vector.broadcast %18 : vector<1x1xf32> to vector<1x1024xf32>
    %21 = arith.mulf %20, %19 : vector<1x1024xf32>
    %22 = arith.addf %17, %21 : vector<1x1024xf32>
    %cst_11 = arith.constant 0.000000e+00 : f32
    %23 = vector.broadcast %cst_11 : f32 to vector<1x1024xf32>
    %24 = arith.maximumf %22, %23 : vector<1x1024xf32>
    %c0_12 = arith.constant 0 : index
    %c0_13 = arith.constant 0 : index
    %25 = vector.load %arg4[%c0_12, %c0_13] : memref<2x1024xf32, #tpu.memory_space<vmem>>, vector<1x1024xf32>
    %26 = arith.mulf %24, %25 : vector<1x1024xf32>
    %cst_14 = arith.constant dense<0.000000e+00> : vector<1xf32>
    %27 = vector.multi_reduction <add>, %26, %cst_14 [1] : vector<1x1024xf32> to vector<1xf32>
    %28 = vector.shape_cast %27 : vector<1xf32> to vector<1x1xf32>
    %c1_15 = arith.constant 1 : index
    %c0_16 = arith.constant 0 : index
    %29 = vector.load %arg4[%c1_15, %c0_16] : memref<2x1024xf32, #tpu.memory_space<vmem>>, vector<1x1024xf32>
    %30 = arith.mulf %24, %29 : vector<1x1024xf32>
    %cst_17 = arith.constant dense<0.000000e+00> : vector<1xf32>
    %31 = vector.multi_reduction <add>, %30, %cst_17 [1] : vector<1x1024xf32> to vector<1xf32>
    %32 = vector.shape_cast %31 : vector<1xf32> to vector<1x1xf32>
    %33 = tpu.concatenate %28, %32 in 1 : vector<1x1xf32>, vector<1x1xf32> -> vector<1x2xf32>
    %c0_18 = arith.constant 0 : index
    %c0_19 = arith.constant 0 : index
    %34 = vector.load %arg5[%c0_18, %c0_19] : memref<1x2xf32, #tpu.memory_space<vmem>>, vector<1x2xf32>
    %35 = arith.addf %33, %34 : vector<1x2xf32>
    %c0_20 = arith.constant 0 : index
    %c0_21 = arith.constant 0 : index
    %c0_22 = arith.constant 0 : index
    %36 = vector.load %arg6[%c0_20, %c0_21, %c0_22] : memref<1x1x2xf32, #tpu.memory_space<vmem>>, vector<1x1x2xf32>
    %37 = vector.shape_cast %36 : vector<1x1x2xf32> to vector<1x2xf32>
    %38 = vector.shape_cast %35 : vector<1x2xf32> to vector<1x1x2xf32>
    tpu.vector_store %arg6[%c0_20, %c0_21, %c0_22], %38 {strides = array<i32>} : memref<1x1x2xf32, #tpu.memory_space<vmem>>, vector<1x1x2xf32>,
    return
  }
  func.func @transform_0(%arg0: i32) -> (i32, i32, i32, i32) {
    %c0_i32 = arith.constant 0 : i32
    %c0_i32_0 = arith.constant 0 : i32
    %c0_i32_1 = arith.constant 0 : i32
    %c0_i32_2 = arith.constant 0 : i32
    return %arg0, %c0_i32, %c0_i32_0, %c0_i32_1 : i32, i32, i32, i32
  }
  func.func @transform_1(%arg0: i32) -> (i32, i32) {
    %c0_i32 = arith.constant 0 : i32
    %c0_i32_0 = arith.constant 0 : i32
    %c0_i32_1 = arith.constant 0 : i32
    return %c0_i32, %c0_i32_0 : i32, i32
  }
  func.func @transform_2(%arg0: i32) -> (i32, i32) {
    %c0_i32 = arith.constant 0 : i32
    %c0_i32_0 = arith.constant 0 : i32
    %c0_i32_1 = arith.constant 0 : i32
    return %c0_i32, %c0_i32_0 : i32, i32
  }
  func.func @transform_3(%arg0: i32) -> (i32, i32) {
    %c0_i32 = arith.constant 0 : i32
    %c0_i32_0 = arith.constant 0 : i32
    %c0_i32_1 = arith.constant 0 : i32
    return %c0_i32, %c0_i32_0 : i32, i32
  }
  func.func @transform_4(%arg0: i32) -> (i32, i32) {
    %c0_i32 = arith.constant 0 : i32
    %c0_i32_0 = arith.constant 0 : i32
    %c0_i32_1 = arith.constant 0 : i32
    return %c0_i32, %c0_i32_0 : i32, i32
  }
  func.func @transform_5(%arg0: i32) -> (i32, i32, i32) {
    %c0_i32 = arith.constant 0 : i32
    %c0_i32_0 = arith.constant 0 : i32
    %c0_i32_1 = arith.constant 0 : i32
    return %arg0, %c0_i32, %c0_i32_0 : i32, i32, i32
  }
}

</mosaic_0001>

<llo_original>
// kernel: tpu_custom_call.1
$region0: #{tpu_custom_call.1}
  #allocation0 [shape = 'u32[]', space=smem, size = 0x4, offset = 0x4, fixed_abs, tag = 'smem constant byte address 0x4 - core index']
  #allocation1 [shape = 'u32[144,128]{1,0:T(1,128)}', space=vmem, size = 0x12000, scoped, tag = 'internal scratch']
  %s0 = inlined_call_operand.hbm [shape: f32[2,3,8,128], index: 0, kind: input, shape index: {}]
  %s1 = inlined_call_operand.hbm [shape: f32[3,1024], index: 1, kind: input, shape index: {}]
  %s2 = inlined_call_operand.hbm [shape: f32[1,1024], index: 2, kind: input, shape index: {}]
  %s3 = inlined_call_operand.hbm [shape: f32[2,1024], index: 3, kind: input, shape index: {}]
  %s4 = inlined_call_operand.vmem [shape: f32[1,2], index: 4, kind: input, shape index: {}]
  %s5 = inlined_call_operand.hbm [shape: f32[2,1,2], index: 5, kind: output, shape index: {}]
  %s6 = sld [smem:[#allocation0]]
  $region69: #{tpu_custom_call.1} parent=0
    _
  %s8 = ssub.s32 1, %s6
  %s9 = scalar_select 0, %s8, %s6
  $region1: #{tpu_custom_call.1} parent=0
    #allocation2 [shape = 'u8[24576]{0}', space=vmem, size = 0x6000, scoped, tag = 'input window, operand 0']
    #allocation3 [shape = 's32[2]{0}', space=sflag, size = 0x8, scoped, tag = 'scoped memory for tpu_custom_call.1']
    #allocation4 [shape = 's32[2]{0}', space=sflag, size = 0x8, scoped, tag = 'scoped memory for tpu_custom_call.1']
    #allocation5 [shape = 'u8[16384]{0}', space=vmem, size = 0x4000, scoped, tag = 'input window, operand 1, single buffered']
    #allocation6 [shape = 's32[1]{0}', space=sflag, size = 0x4, scoped, tag = 'scoped memory for tpu_custom_call.1']
    #allocation7 [shape = 'u8[4096]{0}', space=vmem, size = 0x1000, scoped, tag = 'input window, operand 2, single buffered']
    #allocation8 [shape = 'u8[8192]{0}', space=vmem, size = 0x2000, scoped, tag = 'input window, operand 3, single buffered']
    #allocation9 [shape = 's32[1]{0}', space=sflag, size = 0x4, scoped, tag = 'scoped memory for tpu_custom_call.1']
    #allocation10 [shape = 'u8[1024]{0}', space=vmem, size = 0x400, scoped, tag = 'output window, operand 0']
    %10 = vsyncpa [#allocation3], 0
    %s11 = scalar_lea.sflag [#allocation3], 1
    %12 = vsyncpa %s11, 0
    %13 = vsyncpa [#allocation6], 0
    %14 = vsyncpa [#allocation9], 0
    %15 = vsyncpa [#allocation4], 0
    %s16 = scalar_lea.sflag [#allocation4], 1
    %17 = vsyncpa %s16, 0
    loop: start=0, step=1, limit=4
    $region2: #{tpu_custom_call.1} parent=1 // loop_pre_header
      _
    $region3: #{tpu_custom_call.1} parent=1 // loop_header
      %s19 = sphi 0, %s23
      %p20 = scmp.ge.s32.totalorder %s19, 4
      %s29 = sphi 0, %s31
      %s32 = sphi 0, %s29
      %s33 = sphi 0, %s32
      %s49 = sphi 0, %s33
      %s53 = sphi 0, %s53
      %s55 = sphi 0, %s53
      %s56 = sphi 0, %s55
      %s70 = sphi 0, %s56
      %s74 = sphi 0, %s74
      %s76 = sphi 0, %s74
      %s77 = sphi 0, %s76
      %s91 = sphi 0, %s77
      %s95 = sphi 0, %s95
      %s97 = sphi 0, %s95
      %s98 = sphi 0, %s97
      %s112 = sphi 0, %s98
      %s116 = sphi 0, %s116
      %s118 = sphi 0, %s116
      %s119 = sphi 0, %s118
      %s133 = sphi 0, %s119
      %s139 = sphi 0, %s141
      %s142 = sphi 0, %s139
      %s143 = sphi 0, %s142
      %s159 = sphi 0, %s143
    $region4: #{tpu_custom_call.1} parent=1 // loop_header_branch
      %22 = sbr.rel (%p20) target = $region8
    $region5: #{tpu_custom_call.1} parent=1 // loop_body
      %s24 = ssub.s32 %s19, 1
      %s25 = ssub.s32 %s19, 2
      %s26 = sadd.s32 %s19, 1
      %s27 = ssub.s32 %s19, %s26
      %p28 = scmp.eq.s32.totalorder %s27, 0
      %s30 = sadd.s32 %s29, 1
      %s31 = scalar_select %p28, %s29, %s30
      %p34 = pneg %p28
      %p35 = scmp.eq.s32.totalorder %s19, 1
      %p36 = por %p34, %p35
      %p37 = scmp.ne.s32.totalorder %s29, %s32
      %p38 = scmp.eq.s32.totalorder %s19, 0
      %p39 = por %p37, %p38
      %p40 = scmp.ne.s32.totalorder %s29, %s32
      %p41 = scmp.eq.s32.totalorder %s24, 1
      %p42 = por %p40, %p41
      %p43 = scmp.ne.s32.totalorder %s32, %s33
      %p44 = scmp.eq.s32.totalorder %s24, 0
      %p45 = por %p43, %p44
      %p46 = scmp.ne.s32.totalorder %s32, %s33
      %p47 = scmp.eq.s32.totalorder %s25, 1
      %p48 = por %p46, %p47
      %p50 = scmp.ne.s32.totalorder %s33, %s49
      %p51 = scmp.eq.s32.totalorder %s25, 0
      %p52 = por %p50, %p51
      %s54 = sadd.s32 %s53, 1
      %p57 = scmp.eq.s32.totalorder %s19, 1
      %p58 = scmp.ne.s32.totalorder %s53, %s55
      %p59 = scmp.eq.s32.totalorder %s19, 0
      %p60 = por %p58, %p59
      %p61 = scmp.ne.s32.totalorder %s53, %s55
      %p62 = scmp.eq.s32.totalorder %s24, 1
      %p63 = por %p61, %p62
      %p64 = scmp.ne.s32.totalorder %s55, %s56
      %p65 = scmp.eq.s32.totalorder %s24, 0
      %p66 = por %p64, %p65
      %p67 = scmp.ne.s32.totalorder %s55, %s56
      %p68 = scmp.eq.s32.totalorder %s25, 1
      %p69 = por %p67, %p68
      %p71 = scmp.ne.s32.totalorder %s56, %s70
      %p72 = scmp.eq.s32.totalorder %s25, 0
      %p73 = por %p71, %p72
      %s75 = sadd.s32 %s74, 1
      %p78 = scmp.eq.s32.totalorder %s19, 1
      %p79 = scmp.ne.s32.totalorder %s74, %s76
      %p80 = scmp.eq.s32.totalorder %s19, 0
      %p81 = por %p79, %p80
      %p82 = scmp.ne.s32.totalorder %s74, %s76
      %p83 = scmp.eq.s32.totalorder %s24, 1
      %p84 = por %p82, %p83
      %p85 = scmp.ne.s32.totalorder %s76, %s77
      %p86 = scmp.eq.s32.totalorder %s24, 0
      %p87 = por %p85, %p86
      %p88 = scmp.ne.s32.totalorder %s76, %s77
      %p89 = scmp.eq.s32.totalorder %s25, 1
      %p90 = por %p88, %p89
      %p92 = scmp.ne.s32.totalorder %s77, %s91
      %p93 = scmp.eq.s32.totalorder %s25, 0
      %p94 = por %p92, %p93
      %s96 = sadd.s32 %s95, 1
      %p99 = scmp.eq.s32.totalorder %s19, 1
      %p100 = scmp.ne.s32.totalorder %s95, %s97
      %p101 = scmp.eq.s32.totalorder %s19, 0
      %p102 = por %p100, %p101
      %p103 = scmp.ne.s32.totalorder %s95, %s97
      %p104 = scmp.eq.s32.totalorder %s24, 1
      %p105 = por %p103, %p104
      %p106 = scmp.ne.s32.totalorder %s97, %s98
      %p107 = scmp.eq.s32.totalorder %s24, 0
      %p108 = por %p106, %p107
      %p109 = scmp.ne.s32.totalorder %s97, %s98
      %p110 = scmp.eq.s32.totalorder %s25, 1
      %p111 = por %p109, %p110
      %p113 = scmp.ne.s32.totalorder %s98, %s112
      %p114 = scmp.eq.s32.totalorder %s25, 0
      %p115 = por %p113, %p114
      %s117 = sadd.s32 %s116, 1
      %p120 = scmp.eq.s32.totalorder %s19, 1
      %p121 = scmp.ne.s32.totalorder %s116, %s118
      %p122 = scmp.eq.s32.totalorder %s19, 0
      %p123 = por %p121, %p122
      %p124 = scmp.ne.s32.totalorder %s116, %s118
      %p125 = scmp.eq.s32.totalorder %s24, 1
      %p126 = por %p124, %p125
      %p127 = scmp.ne.s32.totalorder %s118, %s119
      %p128 = scmp.eq.s32.totalorder %s24, 0
      %p129 = por %p127, %p128
      %p130 = scmp.ne.s32.totalorder %s118, %s119
      %p131 = scmp.eq.s32.totalorder %s25, 1
      %p132 = por %p130, %p131
      %p134 = scmp.ne.s32.totalorder %s119, %s133
      %p135 = scmp.eq.s32.totalorder %s25, 0
      %p136 = por %p134, %p135
      %s137 = ssub.s32 %s19, %s26
      %p138 = scmp.eq.s32.totalorder %s137, 0
      %s140 = sadd.s32 %s139, 1
      %s141 = scalar_select %p138, %s139, %s140
      %p144 = pneg %p138
      %p145 = scmp.eq.s32.totalorder %s19, 1
      %p146 = por %p144, %p145
      %p147 = scmp.ne.s32.totalorder %s139, %s142
      %p148 = scmp.eq.s32.totalorder %s19, 0
      %p149 = por %p147, %p148
      %p150 = scmp.ne.s32.totalorder %s139, %s142
      %p151 = scmp.eq.s32.totalorder %s24, 1
      %p152 = por %p150, %p151
      %p153 = scmp.ne.s32.totalorder %s142, %s143
      %p154 = scmp.eq.s32.totalorder %s24, 0
      %p155 = por %p153, %p154
      %p156 = scmp.ne.s32.totalorder %s142, %s143
      %p157 = scmp.eq.s32.totalorder %s25, 1
      %p158 = por %p156, %p157
      %p160 = scmp.ne.s32.totalorder %s143, %s159
      %p161 = scmp.eq.s32.totalorder %s25, 0
      %p162 = por %p160, %p161
      %p163 = scmp.le.s32.totalorder 1, %s19
      %p164 = scmp.lt.s32.totalorder %s19, 3
      %p165 = pnand %p163, %p164
      %p166 = pneg %p165
      // Predicated region
      $region9: #{tpu_custom_call.1} parent=5 // pred_check
        _
      $region10: #{tpu_custom_call.1} parent=5 // pred_check_branch
        %168 = sbr.rel (%p165) target = $region12
      $region11: #{tpu_custom_call.1} parent=5 // pred_region
        %s169 = ssub.s32 %s19, 1
        // Predicated region
        $region13: #{tpu_custom_call.1} parent=11 // pred_check
          %p170 = pneg %p66
        $region14: #{tpu_custom_call.1} parent=11 // pred_check_branch
          %172 = sbr.rel (%p170) target = $region16
        $region15: #{tpu_custom_call.1} parent=11 // pred_region
          %s174 = ssub.s32 512, 512
          %175 = vsyncadd [#allocation6], %s174
          %s177 = sshll.u32 [#allocation5], 4
          %s178 = int_to_ptr.vmem [resolvable:$true] %s177
          %180 = dma.hbm_to_vmem [thread:$0]  %s1, 512, %s178, [#allocation6]
        $region16: #{tpu_custom_call.1} parent=11 // pred_fallthru
          _
        // Predicated region
        $region17: #{tpu_custom_call.1} parent=11 // pred_check
          %p181 = pneg %p87
        $region18: #{tpu_custom_call.1} parent=11 // pred_check_branch
          %183 = sbr.rel (%p181) target = $region20
        $region19: #{tpu_custom_call.1} parent=11 // pred_region
          %s185 = ssub.s32 128, 128
          %186 = vsyncadd [#allocation6], %s185
          %s188 = sshll.u32 [#allocation7], 4
          %s189 = int_to_ptr.vmem [resolvable:$true] %s188
          %191 = dma.hbm_to_vmem [thread:$0]  %s2, 128, %s189, [#allocation6]
        $region20: #{tpu_custom_call.1} parent=11 // pred_fallthru
          _
        // Predicated region
        $region21: #{tpu_custom_call.1} parent=11 // pred_check
          %p192 = pneg %p108
        $region22: #{tpu_custom_call.1} parent=11 // pred_check_branch
          %194 = sbr.rel (%p192) target = $region24
        $region23: #{tpu_custom_call.1} parent=11 // pred_region
          %s196 = ssub.s32 256, 256
          %197 = vsyncadd [#allocation9], %s196
          %s199 = sshll.u32 [#allocation8], 4
          %s200 = int_to_ptr.vmem [resolvable:$true] %s199
          %202 = dma.hbm_to_vmem [thread:$0]  %s3, 256, %s200, [#allocation9]
        $region24: #{tpu_custom_call.1} parent=11 // pred_fallthru
          _
        // Predicated region
        $region25: #{tpu_custom_call.1} parent=11 // pred_check
          %p203 = pneg %p129
        $region26: #{tpu_custom_call.1} parent=11 // pred_check_branch
          %205 = sbr.rel (%p203) target = $region28
        $region27: #{tpu_custom_call.1} parent=11 // pred_region
          _
        $region28: #{tpu_custom_call.1} parent=11 // pred_fallthru
          _
      $region12: #{tpu_custom_call.1} parent=5 // pred_fallthru
        _
      %p206 = scmp.lt.s32.totalorder %s19, 2
      // Predicated region
      $region29: #{tpu_custom_call.1} parent=5 // pred_check
        %p207 = pneg %p206
      $region30: #{tpu_custom_call.1} parent=5 // pred_check_branch
        %209 = sbr.rel (%p207) target = $region32
      $region31: #{tpu_custom_call.1} parent=5 // pred_region
        // Predicated region
        $region33: #{tpu_custom_call.1} parent=31 // pred_check
          %p210 = pneg %p39
        $region34: #{tpu_custom_call.1} parent=31 // pred_check_branch
          %212 = sbr.rel (%p210) target = $region36
        $region35: #{tpu_custom_call.1} parent=31 // pred_region
          %s213 = sand.u32 %s29, 1
          %s214 = scalar_lea.sflag [#allocation3], %s213
          %s215 = sand.u32 %s29, 1
          %s216 = smul.addr %s215, 24
          %s217 = scalar_lea.vmem [#allocation2], %s216
          %s219 = ssub.s32 384, 384
          %220 = vsyncadd %s214, %s219
          %s221 = smul.addr %s19, 3
          %s222 = smul.addr %s221, 128
          %s223 = scalar_lea.hbm %s0, %s222
          %s224 = sshll.u32 %s217, 4
          %s225 = int_to_ptr.vmem [resolvable:$true] %s224
          %230 = dma.hbm_to_vmem [thread:$0]  %s223, 384, %s225, %s214, 128, 128, 8
        $region36: #{tpu_custom_call.1} parent=31 // pred_fallthru
          _
      $region32: #{tpu_custom_call.1} parent=5 // pred_fallthru
        _
      %p231 = scmp.le.s32.totalorder 1, %s19
      %p232 = scmp.lt.s32.totalorder %s19, 3
      %p233 = pnand %p231, %p232
      %p234 = pneg %p233
      // Predicated region
      $region37: #{tpu_custom_call.1} parent=5 // pred_check
        _
      $region38: #{tpu_custom_call.1} parent=5 // pred_check_branch
        %236 = sbr.rel (%p233) target = $region40
      $region39: #{tpu_custom_call.1} parent=5 // pred_region
        %s237 = ssub.s32 %s19, 1
        %s238 = sand.u32 %s32, 1
        %s239 = scalar_lea.sflag [#allocation3], %s238
        %s240 = sand.u32 %s32, 1
        %s241 = smul.addr %s240, 24
        %s242 = scalar_lea.vmem [#allocation2], %s241
        // Predicated region
        $region41: #{tpu_custom_call.1} parent=39 // pred_check
          %p243 = pneg %p45
        $region42: #{tpu_custom_call.1} parent=39 // pred_check_branch
          %245 = sbr.rel (%p243) target = $region44
        $region43: #{tpu_custom_call.1} parent=39 // pred_region
          %246 = dma.done %s239, 384
        $region44: #{tpu_custom_call.1} parent=39 // pred_fallthru
          _
        // Predicated region
        $region45: #{tpu_custom_call.1} parent=39 // pred_check
          %p247 = pneg %p66
        $region46: #{tpu_custom_call.1} parent=39 // pred_check_branch
          %249 = sbr.rel (%p247) target = $region48
        $region47: #{tpu_custom_call.1} parent=39 // pred_region
          %250 = dma.done [#allocation6], 512
        $region48: #{tpu_custom_call.1} parent=39 // pred_fallthru
          _
        // Predicated region
        $region49: #{tpu_custom_call.1} parent=39 // pred_check
          %p251 = pneg %p87
        $region50: #{tpu_custom_call.1} parent=39 // pred_check_branch
          %253 = sbr.rel (%p251) target = $region52
        $region51: #{tpu_custom_call.1} parent=39 // pred_region
          %254 = dma.done [#allocation6], 128
        $region52: #{tpu_custom_call.1} parent=39 // pred_fallthru
          _
        // Predicated region
        $region53: #{tpu_custom_call.1} parent=39 // pred_check
          %p255 = pneg %p108
        $region54: #{tpu_custom_call.1} parent=39 // pred_check_branch
          %257 = sbr.rel (%p255) target = $region56
        $region55: #{tpu_custom_call.1} parent=39 // pred_region
          %258 = dma.done [#allocation9], 256
        $region56: #{tpu_custom_call.1} parent=39 // pred_fallthru
          _
        %s259 = sand.u32 %s32, 1
        %s260 = scalar_lea.sflag [#allocation3], %s259
        %s261 = sand.u32 %s32, 1
        %s262 = smul.addr %s261, 24
        %s263 = scalar_lea.vmem [#allocation2], %s262
        %p264 = pneg %p45
        %p265 = pneg %p42
        %p266 = pneg %p66
        %p267 = pneg %p63
        %p268 = pneg %p87
        %p269 = pneg %p84
        %p270 = pneg %p108
        %p271 = pneg %p105
        %p272 = pneg %p129
        %p273 = pneg %p126
        %p274 = pneg %p155
        %p275 = pneg %p152
        %s276 = sand.u32 %s142, 1
        %s277 = scalar_lea.sflag [#allocation4], %s276
        %s278 = sand.u32 %s142, 1
        %s279 = scalar_lea.vmem [#allocation10], %s278
        %v280 = vld [vmem:[%s242] sm:$0xff]
        %v281 = vld [vmem:[%s242 + $0x8] sm:$0xff]
        %v282 = vld [vmem:[%s242 + $0x10] sm:$0xff]
        %v283 = vrot.slane %v280, 4
        %v284 = vadd.f32 %v280, %v283
        %v285 = vrot.slane %v284, 2
        %v286 = vadd.f32 %v284, %v285
        %v287 = vrot.slane %v286, 1
        %v288 = vadd.f32 %v286, %v287
        %v289 = vrot.slane %v281, 4
        %v290 = vadd.f32 %v281, %v289
        %v291 = vrot.slane %v290, 2
        %v292 = vadd.f32 %v290, %v291
        %v293 = vrot.slane %v292, 1
        %v294 = vadd.f32 %v292, %v293
        %v295 = vrot.slane %v282, 4
        %v296 = vadd.f32 %v282, %v295
        %v297 = vrot.slane %v296, 2
        %v298 = vadd.f32 %v296, %v297
        %v299 = vrot.slane %v298, 1
        %v300 = vadd.f32 %v298, %v299
        %vm304 = vcmask 1041409
        %v305 = vsel %vm304, %v294, %v288
        %vm306 = vcmask 1042434
        %v307 = vsel %vm306, %v300, %v305
        %vm309 = vcmask 1042432
        %v310 = vsel %vm309, %v307, 0.0
        %311 = vadd.xlane.f32.xlu0 %v310
        %v312 = vpop.xlane.xlu0 %311
        %v313 = vmul.f32 %v312, 0.0009765625
        %v314 = vld [vmem:[#allocation7] sm:$0xff]
        %v315 = vld [vmem:[#allocation5] ss:$4 sm:$0xff]
        %v317 = vlaneseq
        %v318 = vshrl.u32 %v317, 7
        %v319 = vsub.s32 0, %v318
        %v320 = vrot.slane %v315, %v319
        %v321 = vlaneseq
        %v322 = vshrl.u32 %v321, 7
        %v323 = vsub.s32 1, %v322
        %v324 = vrot.slane %v315, %v323
        %v325 = vlaneseq
        %v326 = vshrl.u32 %v325, 7
        %v327 = vsub.s32 2, %v326
        %v328 = vrot.slane %v315, %v327
        %v329 = vlaneseq
        %v330 = vshrl.u32 %v329, 7
        %v331 = vsub.s32 3, %v330
        %v332 = vrot.slane %v315, %v331
        %v333 = vlaneseq
        %v334 = vshrl.u32 %v333, 7
        %v335 = vsub.s32 4, %v334
        %v336 = vrot.slane %v315, %v335
        %v337 = vlaneseq
        %v338 = vshrl.u32 %v337, 7
        %v339 = vsub.s32 5, %v338
        %v340 = vrot.slane %v315, %v339
        %v341 = vlaneseq
        %v342 = vshrl.u32 %v341, 7
        %v343 = vsub.s32 6, %v342
        %v344 = vrot.slane %v315, %v343
        %v345 = vlaneseq
        %v346 = vshrl.u32 %v345, 7
        %v347 = vsub.s32 7, %v346
        %v348 = vrot.slane %v315, %v347
        %v357 = vmul.f32 %v313, %v320
        %v358 = vmul.f32 %v313, %v324
        %v359 = vmul.f32 %v313, %v328
        %v360 = vmul.f32 %v313, %v332
        %v361 = vmul.f32 %v313, %v336
        %v362 = vmul.f32 %v313, %v340
        %v363 = vmul.f32 %v313, %v344
        %v364 = vmul.f32 %v313, %v348
        %v373 = vcombine.low %v357, %v358
        %v374 = vcombine.low %v359, %v360
        %v375 = vcombine.low %v361, %v362
        %v376 = vcombine.low %v363, %v364
        %v378 = vunpack.c.l.s4 1966171168
        %v379 = vunpack.c.0.s8 %v378
        %v380 = vlaneseq
        %v381 = vshrl.u32 %v380, 7
        %v382 = vsub.s32 %v379, %v381
        %v383 = vrot.slane %v373, %v382
        %v385 = vunpack.c.l.s4 1966171168
        %v386 = vunpack.c.0.s8 %v385
        %v387 = vlaneseq
        %v388 = vshrl.u32 %v387, 7
        %v389 = vsub.s32 %v386, %v388
        %v390 = vrot.slane %v374, %v389
        %v392 = vunpack.c.l.s4 1966171168
        %v393 = vunpack.c.0.s8 %v392
        %v394 = vlaneseq
        %v395 = vshrl.u32 %v394, 7
        %v396 = vsub.s32 %v393, %v395
        %v397 = vrot.slane %v375, %v396
        %v399 = vunpack.c.l.s4 1966171168
        %v400 = vunpack.c.0.s8 %v399
        %v401 = vlaneseq
        %v402 = vshrl.u32 %v401, 7
        %v403 = vsub.s32 %v400, %v402
        %v404 = vrot.slane %v376, %v403
        %v405 = vcombine.low %v383, %v390
        %v406 = vcombine.low %v397, %v404
        %v408 = vunpack.c.l.s4 1966171168
        %v409 = vunpack.c.0.s8 %v408
        %v410 = vlaneseq
        %v411 = vshrl.u32 %v410, 7
        %v412 = vsub.s32 %v409, %v411
        %v413 = vrot.slane %v405, %v412
        %v415 = vunpack.c.l.s4 1966171168
        %v416 = vunpack.c.0.s8 %v415
        %v417 = vlaneseq
        %v418 = vshrl.u32 %v417, 7
        %v419 = vsub.s32 %v416, %v418
        %v420 = vrot.slane %v406, %v419
        %v421 = vcombine.low %v413, %v420
        %v423 = vadd.f32 %v314, %v421
        %s424 = scalar_lea.vmem [#allocation5], 1
        %v425 = vld [vmem:[%s424] ss:$4 sm:$0xff]
        %v427 = vlaneseq
        %v428 = vshrl.u32 %v427, 7
        %v429 = vsub.s32 0, %v428
        %v430 = vrot.slane %v425, %v429
        %v431 = vlaneseq
        %v432 = vshrl.u32 %v431, 7
        %v433 = vsub.s32 1, %v432
        %v434 = vrot.slane %v425, %v433
        %v435 = vlaneseq
        %v436 = vshrl.u32 %v435, 7
        %v437 = vsub.s32 2, %v436
        %v438 = vrot.slane %v425, %v437
        %v439 = vlaneseq
        %v440 = vshrl.u32 %v439, 7
        %v441 = vsub.s32 3, %v440
        %v442 = vrot.slane %v425, %v441
        %v443 = vlaneseq
        %v444 = vshrl.u32 %v443, 7
        %v445 = vsub.s32 4, %v444
        %v446 = vrot.slane %v425, %v445
        %v447 = vlaneseq
        %v448 = vshrl.u32 %v447, 7
        %v449 = vsub.s32 5, %v448
        %v450 = vrot.slane %v425, %v449
        %v451 = vlaneseq
        %v452 = vshrl.u32 %v451, 7
        %v453 = vsub.s32 6, %v452
        %v454 = vrot.slane %v425, %v453
        %v455 = vlaneseq
        %v456 = vshrl.u32 %v455, 7
        %v457 = vsub.s32 7, %v456
        %v458 = vrot.slane %v425, %v457
        %v467 = vmul.f32 %v313, %v430
        %v468 = vmul.f32 %v313, %v434
        %v469 = vmul.f32 %v313, %v438
        %v470 = vmul.f32 %v313, %v442
        %v471 = vmul.f32 %v313, %v446
        %v472 = vmul.f32 %v313, %v450
        %v473 = vmul.f32 %v313, %v454
        %v474 = vmul.f32 %v313, %v458
        %v483 = vcombine.low %v467, %v468
        %v484 = vcombine.low %v469, %v470
        %v485 = vcombine.low %v471, %v472
        %v486 = vcombine.low %v473, %v474
        %v488 = vunpack.c.l.s4 1966171168
        %v489 = vunpack.c.0.s8 %v488
        %v490 = vlaneseq
        %v491 = vshrl.u32 %v490, 7
        %v492 = vsub.s32 %v489, %v491
        %v493 = vrot.slane %v483, %v492
        %v495 = vunpack.c.l.s4 1966171168
        %v496 = vunpack.c.0.s8 %v495
        %v497 = vlaneseq
        %v498 = vshrl.u32 %v497, 7
        %v499 = vsub.s32 %v496, %v498
        %v500 = vrot.slane %v484, %v499
        %v502 = vunpack.c.l.s4 1966171168
        %v503 = vunpack.c.0.s8 %v502
        %v504 = vlaneseq
        %v505 = vshrl.u32 %v504, 7
        %v506 = vsub.s32 %v503, %v505
        %v507 = vrot.slane %v485, %v506
        %v509 = vunpack.c.l.s4 1966171168
        %v510 = vunpack.c.0.s8 %v509
        %v511 = vlaneseq
        %v512 = vshrl.u32 %v511, 7
        %v513 = vsub.s32 %v510, %v512
        %v514 = vrot.slane %v486, %v513
        %v515 = vcombine.high %v493, %v500
        %v516 = vcombine.high %v507, %v514
        %v518 = vunpack.c.l.s4 1966171168
        %v519 = vunpack.c.0.s8 %v518
        %v520 = vlaneseq
        %v521 = vshrl.u32 %v520, 7
        %v522 = vsub.s32 %v519, %v521
        %v523 = vrot.slane %v515, %v522
        %v525 = vunpack.c.l.s4 1966171168
        %v526 = vunpack.c.0.s8 %v525
        %v527 = vlaneseq
        %v528 = vshrl.u32 %v527, 7
        %v529 = vsub.s32 %v526, %v528
        %v530 = vrot.slane %v516, %v529
        %v531 = vcombine.low %v523, %v530
        %v533 = vadd.f32 %v423, %v531
        %s534 = scalar_lea.vmem [#allocation5], 2
        %v535 = vld [vmem:[%s534] ss:$4 sm:$0xff]
        %v537 = vlaneseq
        %v538 = vshrl.u32 %v537, 7
        %v539 = vsub.s32 0, %v538
        %v540 = vrot.slane %v535, %v539
        %v541 = vlaneseq
        %v542 = vshrl.u32 %v541, 7
        %v543 = vsub.s32 1, %v542
        %v544 = vrot.slane %v535, %v543
        %v545 = vlaneseq
        %v546 = vshrl.u32 %v545, 7
        %v547 = vsub.s32 2, %v546
        %v548 = vrot.slane %v535, %v547
        %v549 = vlaneseq
        %v550 = vshrl.u32 %v549, 7
        %v551 = vsub.s32 3, %v550
        %v552 = vrot.slane %v535, %v551
        %v553 = vlaneseq
        %v554 = vshrl.u32 %v553, 7
        %v555 = vsub.s32 4, %v554
        %v556 = vrot.slane %v535, %v555
        %v557 = vlaneseq
        %v558 = vshrl.u32 %v557, 7
        %v559 = vsub.s32 5, %v558
        %v560 = vrot.slane %v535, %v559
        %v561 = vlaneseq
        %v562 = vshrl.u32 %v561, 7
        %v563 = vsub.s32 6, %v562
        %v564 = vrot.slane %v535, %v563
        %v565 = vlaneseq
        %v566 = vshrl.u32 %v565, 7
        %v567 = vsub.s32 7, %v566
        %v568 = vrot.slane %v535, %v567
        %v577 = vmul.f32 %v313, %v540
        %v578 = vmul.f32 %v313, %v544
        %v579 = vmul.f32 %v313, %v548
        %v580 = vmul.f32 %v313, %v552
        %v581 = vmul.f32 %v313, %v556
        %v582 = vmul.f32 %v313, %v560
        %v583 = vmul.f32 %v313, %v564
        %v584 = vmul.f32 %v313, %v568
        %v593 = vcombine.low %v577, %v578
        %v594 = vcombine.low %v579, %v580
        %v595 = vcombine.low %v581, %v582
        %v596 = vcombine.low %v583, %v584
        %v598 = vunpack.c.l.s4 1966171168
        %v599 = vunpack.c.0.s8 %v598
        %v600 = vlaneseq
        %v601 = vshrl.u32 %v600, 7
        %v602 = vsub.s32 %v599, %v601
        %v603 = vrot.slane %v593, %v602
        %v605 = vunpack.c.l.s4 1966171168
        %v606 = vunpack.c.0.s8 %v605
        %v607 = vlaneseq
        %v608 = vshrl.u32 %v607, 7
        %v609 = vsub.s32 %v606, %v608
        %v610 = vrot.slane %v594, %v609
        %v612 = vunpack.c.l.s4 1966171168
        %v613 = vunpack.c.0.s8 %v612
        %v614 = vlaneseq
        %v615 = vshrl.u32 %v614, 7
        %v616 = vsub.s32 %v613, %v615
        %v617 = vrot.slane %v595, %v616
        %v619 = vunpack.c.l.s4 1966171168
        %v620 = vunpack.c.0.s8 %v619
        %v621 = vlaneseq
        %v622 = vshrl.u32 %v621, 7
        %v623 = vsub.s32 %v620, %v622
        %v624 = vrot.slane %v596, %v623
        %v625 = vcombine.low %v603, %v610
        %v626 = vcombine.low %v617, %v624
        %v628 = vunpack.c.l.s4 1966171168
        %v629 = vunpack.c.0.s8 %v628
        %v630 = vlaneseq
        %v631 = vshrl.u32 %v630, 7
        %v632 = vsub.s32 %v629, %v631
        %v633 = vrot.slane %v625, %v632
        %v635 = vunpack.c.l.s4 1966171168
        %v636 = vunpack.c.0.s8 %v635
        %v637 = vlaneseq
        %v638 = vshrl.u32 %v637, 7
        %v639 = vsub.s32 %v636, %v638
        %v640 = vrot.slane %v626, %v639
        %v641 = vcombine.high %v633, %v640
        %v643 = vadd.f32 %v533, %v641
        %v644 = vmax.f32 %v643, 0.0
        %v645 = vld [vmem:[#allocation8] ss:$2 sm:$0xff]
        %v646 = vmul.f32 %v644, %v645
        %v648 = vlaneseq
        %v649 = vshrl.u32 %v648, 7
        %v650 = vsub.s32 0, %v649
        %v651 = vrot.slane %v646, %v650
        %v652 = vlaneseq
        %v653 = vshrl.u32 %v652, 7
        %v654 = vsub.s32 1, %v653
        %v655 = vrot.slane %v646, %v654
        %v656 = vlaneseq
        %v657 = vshrl.u32 %v656, 7
        %v658 = vsub.s32 2, %v657
        %v659 = vrot.slane %v646, %v658
        %v660 = vlaneseq
        %v661 = vshrl.u32 %v660, 7
        %v662 = vsub.s32 3, %v661
        %v663 = vrot.slane %v646, %v662
        %v664 = vlaneseq
        %v665 = vshrl.u32 %v664, 7
        %v666 = vsub.s32 4, %v665
        %v667 = vrot.slane %v646, %v666
        %v668 = vlaneseq
        %v669 = vshrl.u32 %v668, 7
        %v670 = vsub.s32 5, %v669
        %v671 = vrot.slane %v646, %v670
        %v672 = vlaneseq
        %v673 = vshrl.u32 %v672, 7
        %v674 = vsub.s32 6, %v673
        %v675 = vrot.slane %v646, %v674
        %v676 = vlaneseq
        %v677 = vshrl.u32 %v676, 7
        %v678 = vsub.s32 7, %v677
        %v679 = vrot.slane %v646, %v678
        %vm688 = vcmask 1040384
        %v689 = vsel %vm688, %v651, 0.0
        %v690 = vsel %vm688, %v655, 0.0
        %v691 = vadd.f32 %v689, %v690
        %v692 = vsel %vm688, %v659, 0.0
        %v693 = vadd.f32 %v691, %v692
        %v694 = vsel %vm688, %v663, 0.0
        %v695 = vadd.f32 %v693, %v694
        %v696 = vsel %vm688, %v667, 0.0
        %v697 = vadd.f32 %v695, %v696
        %v698 = vsel %vm688, %v671, 0.0
        %v699 = vadd.f32 %v697, %v698
        %v700 = vsel %vm688, %v675, 0.0
        %v701 = vadd.f32 %v699, %v700
        %v702 = vsel %vm688, %v679, 0.0
        %v703 = vadd.f32 %v701, %v702
        %704 = vadd.xlane.f32.xlu0 %v703
        %v705 = vpop.xlane.xlu0 %704
        %s706 = scalar_lea.vmem [#allocation8], 1
        %v707 = vld [vmem:[%s706] ss:$2 sm:$0xff]
        %v708 = vmul.f32 %v644, %v707
        %v710 = vlaneseq
        %v711 = vshrl.u32 %v710, 7
        %v712 = vsub.s32 0, %v711
        %v713 = vrot.slane %v708, %v712
        %v714 = vlaneseq
        %v715 = vshrl.u32 %v714, 7
        %v716 = vsub.s32 1, %v715
        %v717 = vrot.slane %v708, %v716
        %v718 = vlaneseq
        %v719 = vshrl.u32 %v718, 7
        %v720 = vsub.s32 2, %v719
        %v721 = vrot.slane %v708, %v720
        %v722 = vlaneseq
        %v723 = vshrl.u32 %v722, 7
        %v724 = vsub.s32 3, %v723
        %v725 = vrot.slane %v708, %v724
        %v726 = vlaneseq
        %v727 = vshrl.u32 %v726, 7
        %v728 = vsub.s32 4, %v727
        %v729 = vrot.slane %v708, %v728
        %v730 = vlaneseq
        %v731 = vshrl.u32 %v730, 7
        %v732 = vsub.s32 5, %v731
        %v733 = vrot.slane %v708, %v732
        %v734 = vlaneseq
        %v735 = vshrl.u32 %v734, 7
        %v736 = vsub.s32 6, %v735
        %v737 = vrot.slane %v708, %v736
        %v738 = vlaneseq
        %v739 = vshrl.u32 %v738, 7
        %v740 = vsub.s32 7, %v739
        %v741 = vrot.slane %v708, %v740
        %v750 = vsel %vm688, %v713, 0.0
        %v751 = vsel %vm688, %v717, 0.0
        %v752 = vadd.f32 %v750, %v751
        %v753 = vsel %vm688, %v721, 0.0
        %v754 = vadd.f32 %v752, %v753
        %v755 = vsel %vm688, %v725, 0.0
        %v756 = vadd.f32 %v754, %v755
        %v757 = vsel %vm688, %v729, 0.0
        %v758 = vadd.f32 %v756, %v757
        %v759 = vsel %vm688, %v733, 0.0
        %v760 = vadd.f32 %v758, %v759
        %v761 = vsel %vm688, %v737, 0.0
        %v762 = vadd.f32 %v760, %v761
        %v763 = vsel %vm688, %v741, 0.0
        %v764 = vadd.f32 %v762, %v763
        %765 = vadd.xlane.f32.xlu0 %v764
        %v766 = vpop.xlane.xlu0 %765
        %vm767 = vcmask 7168
        %v768 = vsel %vm767, %v705, %v766
        %v769 = vld [vmem:[%s4] sm:$0x1]
        %v770 = vadd.f32 %v768, %v769
        %vm771 = vcmask 8192
        %772 = vst.msk [vmem:[%s279] sm:$0x1] %vm771, %v770
        %s773 = sand.u32 %s142, 1
        %s774 = scalar_lea.sflag [#allocation4], %s773
        %s775 = sand.u32 %s142, 1
        %s776 = scalar_lea.vmem [#allocation10], %s775
        // Predicated region
        $region57: #{tpu_custom_call.1} parent=39 // pred_check
          %p777 = pneg %p152
        $region58: #{tpu_custom_call.1} parent=39 // pred_check_branch
          %779 = sbr.rel (%p777) target = $region60
        $region59: #{tpu_custom_call.1} parent=39 // pred_region
          %s781 = ssub.s32 16, 16
          %782 = vsyncadd %s774, %s781
          %s783 = smul.addr %s24, 16
          %s784 = scalar_lea.hbm %s5, %s783
          %s786 = sshll.u32 %s776, 4
          %s787 = int_to_ptr.vmem [resolvable:$true] %s786
          %789 = dma.vmem_to_hbm [thread:$0]  %s787, 16, %s784, %s774
        $region60: #{tpu_custom_call.1} parent=39 // pred_fallthru
          _
      $region40: #{tpu_custom_call.1} parent=5 // pred_fallthru
        _
      %p790 = scmp.le.s32.totalorder 2, %s19
      // Predicated region
      $region61: #{tpu_custom_call.1} parent=5 // pred_check
        %p791 = pneg %p790
      $region62: #{tpu_custom_call.1} parent=5 // pred_check_branch
        %793 = sbr.rel (%p791) target = $region64
      $region63: #{tpu_custom_call.1} parent=5 // pred_region
        %s794 = ssub.s32 %s19, 2
        // Predicated region
        $region65: #{tpu_custom_call.1} parent=63 // pred_check
          %p795 = pneg %p158
        $region66: #{tpu_custom_call.1} parent=63 // pred_check_branch
          %797 = sbr.rel (%p795) target = $region68
        $region67: #{tpu_custom_call.1} parent=63 // pred_region
          %s798 = sand.u32 %s143, 1
          %s799 = scalar_lea.sflag [#allocation4], %s798
          %s800 = sand.u32 %s143, 1
          %s801 = scalar_lea.vmem [#allocation10], %s800
          %802 = dma.done %s799, 16
        $region68: #{tpu_custom_call.1} parent=63 // pred_fallthru
          _
      $region64: #{tpu_custom_call.1} parent=5 // pred_fallthru
        _
    $region6: #{tpu_custom_call.1} parent=1 // loop_footer
      %s23 = sadd.s32 1, %s19
    $region7: #{tpu_custom_call.1} parent=1 // loop_footer_branch
      %18 = sbr.rel target = $region3
    $region8: #{tpu_custom_call.1} parent=1 // loop_exit
      _
    %803 = vsyncpa [#allocation3], 1
    %s804 = scalar_lea.sflag [#allocation3], 1
    %805 = vsyncpa %s804, 1
    %806 = vsyncpa [#allocation6], 1
    %807 = vsyncpa [#allocation9], 1
    %808 = vsyncpa [#allocation4], 1
    %s809 = scalar_lea.sflag [#allocation4], 1
    %810 = vsyncpa %s809, 1

</llo_original>
